<compile_context>
chip_gen: v6e
topology: v6e:2x2x1
jax: 0.10.0
libtpu: 0.0.40
codegen_flags: <defaults>
</compile_context>

<pallas_src>
import jax
import jax.numpy as jnp
from jax.experimental import pallas as pl
from jax.experimental.pallas import tpu as pltpu

TQ = 256          # query tile   (must equal TK: the causal skip/mask logic assumes it)
TK = 256          # key/value tile
LANE = 128        # pad feature dims to multiples of the lane width
DROP_P = 0.5      # module-level nn.Dropout(0.5), training mode


def _round_up(n, m):
    return ((n + m - 1) // m) * m


def _pad2d(a, rows, cols):
    return jnp.pad(a, ((0, rows - a.shape[0]), (0, cols - a.shape[1])))


# ----------------------------------------------------------------------------
# Kernel 1: fused QKV projection (1/sqrt(d_out) folded into the Q columns).
# Output layout: three contiguous slabs (3, S, D) so downstream K/V tile DMAs
# are dense bursts instead of strided reads of an interleaved (S, 3D) slab.
# ----------------------------------------------------------------------------
def _qkv_proj_kernel(x_ref, w_ref, qkv_ref):
    d = qkv_ref.shape[-1]
    fused = jnp.dot(x_ref[...], w_ref[...],
                    preferred_element_type=jnp.float32)      # (rows, 3*d) f32
    # Lane-aligned column slices (multiples of 128) -> essentially free.
    qkv_ref[0, :, :] = fused[:, 0:d].astype(qkv_ref.dtype)
    qkv_ref[1, :, :] = fused[:, d:2 * d].astype(qkv_ref.dtype)
    qkv_ref[2, :, :] = fused[:, 2 * d:3 * d].astype(qkv_ref.dtype)


# ----------------------------------------------------------------------------
# Kernel 2: causal flash attention + dropout (online softmax).
# ----------------------------------------------------------------------------
def _flash_causal_dropout_kernel(q_ref, k_ref, v_ref, keep_ref, o_ref,
                                 m_sc, l_sc, acc_sc):
    qi = pl.program_id(0)
    kj = pl.program_id(1)

    @pl.when(kj == 0)
    def _init():
        m_sc[...] = jnp.full_like(m_sc, -jnp.inf)
        l_sc[...] = jnp.zeros_like(l_sc)
        acc_sc[...] = jnp.zeros_like(acc_sc)

    def _update(masked):
        q = q_ref[...]                                        # (TQ, D) bf16, scale folded
        k = k_ref[...]                                        # (TK, D) bf16
        # q @ k^T without materializing a transpose: contract the last dims.
        s = jax.lax.dot_general(q, k, (((1,), (1,)), ((), ())),
                                preferred_element_type=jnp.float32)   # (TQ, TK) f32
        if masked:
            # Diagonal tile only: local causal mask (tq == tk makes the tile
            # offsets cancel, so two thin iotas suffice).
            row = jax.lax.broadcasted_iota(jnp.int32, (q.shape[0], 1), 0)
            col = jax.lax.broadcasted_iota(jnp.int32, (1, k.shape[0]), 1)
            s = jnp.where(col > row, -jnp.inf, s)

        m_prev = m_sc[...]
        m_new = jnp.maximum(m_prev, jnp.max(s, axis=1, keepdims=True))
        alpha = jnp.exp(m_prev - m_new)
        p = jnp.exp(s - m_new)                                # (TQ, TK) f32

        l_sc[...] = alpha * l_sc[...] + jnp.sum(p, axis=1, keepdims=True)
        # Dropout on un-normalized p commutes with the per-row normalizer; the
        # 1/(1-p) scale is applied once in the finalize, not per tile.
        p_keep = (p * keep_ref[...].astype(jnp.float32)).astype(v_ref.dtype)
        acc_sc[...] = alpha * acc_sc[...] + jnp.dot(
            p_keep, v_ref[...], preferred_element_type=jnp.float32)
        m_sc[...] = m_new

    @pl.when(kj < qi)          # interior tiles: every key is strictly in the past
    def _interior():
        _update(masked=False)

    @pl.when(kj == qi)         # diagonal tile: apply the causal mask
    def _diag():
        _update(masked=True)

    @pl.when(kj == pl.num_programs(1) - 1)
    def _finalize():
        # Diagonal is never masked -> l >= 1 per row, no division hazard.
        inv_l = pl.reciprocal(l_sc[...], approx=True)
        o_ref[...] = (acc_sc[...] * (inv_l * (1.0 / (1.0 - DROP_P)))
                      ).astype(o_ref.dtype)


# ----------------------------------------------------------------------------
# Wrapper
# ----------------------------------------------------------------------------
def causal_attention_v2(x, w_query, w_key, w_value, keep_mask):
    """Forward of CasualAttention_v2 + Dropout(0.5) (training mode).

    x:         (S, d_in)  float32
    w_*:       (d_in, d_out) float32
    keep_mask: (S, S) int8/bool; 0 where dropped, 1 where kept.
    returns:   (S, d_out) float32
    """
    assert TQ == TK, "causal skip/mask logic assumes equal q and kv tiles"
    S, d_in = x.shape
    d_out = w_query.shape[1]

    s_pad = _round_up(S, TQ)
    din_pad = _round_up(d_in, LANE)
    d_pad = _round_up(d_out, LANE)
    n_q = s_pad // TQ
    n_k = s_pad // TK

    scale = 1.0 / (d_out ** 0.5)        # keys.shape[-1] ** 0.5 in the module

    # Zero-pad to aligned shapes (zeros are inert in every matmul; padded key
    # columns are removed by the causal mask for all real rows).
    x_p = _pad2d(x, s_pad, din_pad)
    w_fused = jnp.concatenate(
        [_pad2d(w_query * scale, din_pad, d_pad),   # scale folded into Wq
         _pad2d(w_key, din_pad, d_pad),
         _pad2d(w_value, din_pad, d_pad)], axis=1)  # (din_pad, 3*d_pad)
    keep_p = _pad2d(keep_mask.astype(jnp.int8), s_pad, s_pad)

    # ---- fused QKV projection (bf16 out -> bf16 MXU inputs downstream) ------
    qkv_rows = 512 if s_pad % 512 == 0 else TQ      # projection is HBM-bound
    qkv = pl.pallas_call(
        _qkv_proj_kernel,
        out_shape=jax.ShapeDtypeStruct((3, s_pad, d_pad), jnp.bfloat16),
        grid=(s_pad // qkv_rows,),
        in_specs=[pl.BlockSpec((qkv_rows, din_pad), lambda i: (i, 0)),
                  pl.BlockSpec((din_pad, 3 * d_pad), lambda i: (0, 0))],
        out_specs=pl.BlockSpec((3, qkv_rows, d_pad), lambda i: (0, i, 0)),
        compiler_params=pltpu.CompilerParams(
            dimension_semantics=("parallel",),
            vmem_limit_bytes=32 * 1024 * 1024),
    )(x_p, w_fused)

    # ---- flash-style causal attention + dropout -----------------------------
    # Strictly-future kv tiles are compute-skipped in the kernel; clamping the
    # K/V/mask index maps to min(kj, qi) makes those dead steps reuse the
    # already-resident block, so they issue no DMA either.
    out_p = pl.pallas_call(
        _flash_causal_dropout_kernel,
        out_shape=jax.ShapeDtypeStruct((s_pad, d_pad), jnp.bfloat16),
        grid=(n_q, n_k),
        in_specs=[
            pl.BlockSpec((None, TQ, d_pad), lambda qi, kj: (0, qi, 0)),
            pl.BlockSpec((None, TK, d_pad),
                         lambda qi, kj: (1, jnp.minimum(kj, qi), 0)),
            pl.BlockSpec((None, TK, d_pad),
                         lambda qi, kj: (2, jnp.minimum(kj, qi), 0)),
            pl.BlockSpec((TQ, TK),
                         lambda qi, kj: (qi, jnp.minimum(kj, qi))),
        ],
        out_specs=pl.BlockSpec((TQ, d_pad), lambda qi, kj: (qi, 0)),
        scratch_shapes=[pltpu.VMEM((TQ, 1), jnp.float32),       # running max
                        pltpu.VMEM((TQ, 1), jnp.float32),       # running sum
                        pltpu.VMEM((TQ, d_pad), jnp.float32)],  # accumulator
        compiler_params=pltpu.CompilerParams(
            dimension_semantics=("parallel", "arbitrary"),
            vmem_limit_bytes=32 * 1024 * 1024),
    )(qkv, qkv, qkv, keep_p)

    return out_p[:S, :d_out].astype(jnp.float32)


def make_keep_mask(key, s, p=DROP_P):
    """Training-mode dropout keep mask: 0 w.p. p, else 1 (int8)."""
    return jax.random.bernoulli(key, 1.0 - p, (s, s)).astype(jnp.int8)


def _reference(x, w_query, w_key, w_value, keep_mask):
    """Pure-JAX mirror of the PyTorch forward (same dropout mask, and the same
    bf16 casts on the attention-matmul inputs as the kernel uses)."""
    d_out = w_query.shape[1]
    scale = 1.0 / (d_out ** 0.5)
    q = (x @ (w_query * scale)).astype(jnp.bfloat16)
    k = (x @ w_key).astype(jnp.bfloat16)
    v = (x @ w_value).astype(jnp.bfloat16)
    s = jax.lax.dot_general(q, k, (((1,), (1,)), ((), ())),
                            preferred_element_type=jnp.float32)
    S = x.shape[0]
    mask = jnp.triu(jnp.ones((S, S), dtype=bool), k=1)
    s = jnp.where(mask, -jnp.inf, s)
    w = jax.nn.softmax(s, axis=1)
    w = w * (keep_mask.astype(jnp.float32) / (1.0 - DROP_P))
    return jnp.dot(w.astype(jnp.bfloat16), v, preferred_element_type=jnp.float32)


if __name__ == "__main__":
    key = jax.random.PRNGKey(0)
    k_x, k_q, k_k, k_v, k_drop = jax.random.split(key, 5)

    seq, d_in, d_out = 8, 32, 16

    x = jax.random.normal(k_x, (seq, d_in), dtype=jnp.float32)
    # nn.Parameter(torch.rand(d_in, d_out)) -> uniform [0, 1)
    w_query = jax.random.uniform(k_q, (d_in, d_out), dtype=jnp.float32)
    w_key = jax.random.uniform(k_k, (d_in, d_out), dtype=jnp.float32)
    w_value = jax.random.uniform(k_v, (d_in, d_out), dtype=jnp.float32)

    keep_mask = make_keep_mask(k_drop, seq, p=DROP_P)

    out = causal_attention_v2(x, w_query, w_key, w_value, keep_mask)
    out = jax.block_until_ready(out)

    ref = _reference(x, w_query, w_key, w_value, keep_mask)
    assert out.shape == (seq, d_out)
    assert bool(jnp.all(jnp.isfinite(out)))
    assert jnp.allclose(out, ref, rtol=5e-2, atol=5e-2), (
        "max abs err vs reference: %f" % float(jnp.max(jnp.abs(out - ref))))
    print("KERNEL_OK")
</pallas_src>

<mosaic_0001>
module attributes {stable_mosaic.version = 11 : i64} {
  func.func @_qkv_proj_kernel(%arg0: i32, %arg1: memref<256x128xf32, #tpu.memory_space<vmem>>, %arg2: memref<128x384xf32, #tpu.memory_space<vmem>>, %arg3: memref<3x256x128xbf16, #tpu.memory_space<vmem>>) attributes {dimension_semantics = [#tpu.dimension_semantics<parallel>], iteration_bounds = array<i64: 1>, scalar_prefetch = 0 : i64, scratch_operands = 0 : i64, tpu.core_type = #tpu.core_type<tc>, window_params = [{transform_indices = @transform_0, window_bounds = array<i64: 256, 128>}, {pipeline_mode = #tpu.pipeline_mode<synchronous>, transform_indices = @transform_1, window_bounds = array<i64: 128, 384>}, {transform_indices = @transform_2, window_bounds = array<i64: 3, 256, 128>}]} {
    %c0 = arith.constant 0 : index
    %c0_0 = arith.constant 0 : index
    %0 = vector.load %arg1[%c0, %c0_0] : memref<256x128xf32, #tpu.memory_space<vmem>>, vector<256x128xf32>
    %c0_1 = arith.constant 0 : index
    %c0_2 = arith.constant 0 : index
    %1 = vector.load %arg2[%c0_1, %c0_2] : memref<128x384xf32, #tpu.memory_space<vmem>>, vector<128x384xf32>
    %cst = arith.constant dense<0.000000e+00> : vector<256x384xf32>
    %2 = tpu.matmul %0, %1, %cst {dimension_numbers = #tpu.dot_dimension_numbers<[1], [0], [0], [1], [0, 0, 1, 1], [], []>} : vector<256x128xf32>, vector<128x384xf32>, vector<256x384xf32> -> vector<256x384xf32>
    %3 = vector.extract_strided_slice %2 {offsets = [0, 0], sizes = [256, 128], strides = [1, 1]} : vector<256x384xf32> to vector<256x128xf32>
    %4 = arith.truncf %3 : vector<256x128xf32> to vector<256x128xbf16>
    %c0_3 = arith.constant 0 : index
    %c0_4 = arith.constant 0 : index
    %c0_5 = arith.constant 0 : index
    %5 = vector.load %arg3[%c0_3, %c0_4, %c0_5] : memref<3x256x128xbf16, #tpu.memory_space<vmem>>, vector<1x256x128xbf16>
    %6 = vector.shape_cast %5 : vector<1x256x128xbf16> to vector<256x128xbf16>
    %7 = vector.shape_cast %4 : vector<256x128xbf16> to vector<1x256x128xbf16>
    tpu.vector_store %arg3[%c0_3, %c0_4, %c0_5], %7 {strides = array<i32>} : memref<3x256x128xbf16, #tpu.memory_space<vmem>>, vector<1x256x128xbf16>,
    %8 = vector.extract_strided_slice %2 {offsets = [0, 128], sizes = [256, 128], strides = [1, 1]} : vector<256x384xf32> to vector<256x128xf32>
    %9 = arith.truncf %8 : vector<256x128xf32> to vector<256x128xbf16>
    %c1 = arith.constant 1 : index
    %c0_6 = arith.constant 0 : index
    %c0_7 = arith.constant 0 : index
    %10 = vector.load %arg3[%c1, %c0_6, %c0_7] : memref<3x256x128xbf16, #tpu.memory_space<vmem>>, vector<1x256x128xbf16>
    %11 = vector.shape_cast %10 : vector<1x256x128xbf16> to vector<256x128xbf16>
    %12 = vector.shape_cast %9 : vector<256x128xbf16> to vector<1x256x128xbf16>
    tpu.vector_store %arg3[%c1, %c0_6, %c0_7], %12 {strides = array<i32>} : memref<3x256x128xbf16, #tpu.memory_space<vmem>>, vector<1x256x128xbf16>,
    %13 = vector.extract_strided_slice %2 {offsets = [0, 256], sizes = [256, 128], strides = [1, 1]} : vector<256x384xf32> to vector<256x128xf32>
    %14 = arith.truncf %13 : vector<256x128xf32> to vector<256x128xbf16>
    %c2 = arith.constant 2 : index
    %c0_8 = arith.constant 0 : index
    %c0_9 = arith.constant 0 : index
    %15 = vector.load %arg3[%c2, %c0_8, %c0_9] : memref<3x256x128xbf16, #tpu.memory_space<vmem>>, vector<1x256x128xbf16>
    %16 = vector.shape_cast %15 : vector<1x256x128xbf16> to vector<256x128xbf16>
    %17 = vector.shape_cast %14 : vector<256x128xbf16> to vector<1x256x128xbf16>
    tpu.vector_store %arg3[%c2, %c0_8, %c0_9], %17 {strides = array<i32>} : memref<3x256x128xbf16, #tpu.memory_space<vmem>>, vector<1x256x128xbf16>,
    return
  }
  func.func @transform_0(%arg0: i32) -> (i32, i32) {
    %c0_i32 = arith.constant 0 : i32
    %c0_i32_0 = arith.constant 0 : i32
    return %arg0, %c0_i32 : i32, i32
  }
  func.func @transform_1(%arg0: i32) -> (i32, i32) {
    %c0_i32 = arith.constant 0 : i32
    %c0_i32_0 = arith.constant 0 : i32
    %c0_i32_1 = arith.constant 0 : i32
    return %c0_i32, %c0_i32_0 : i32, i32
  }
  func.func @transform_2(%arg0: i32) -> (i32, i32, i32) {
    %c0_i32 = arith.constant 0 : i32
    %c0_i32_0 = arith.constant 0 : i32
    %c0_i32_1 = arith.constant 0 : i32
    return %c0_i32, %arg0, %c0_i32_0 : i32, i32, i32
  }
}

</mosaic_0001>

<llo_original>
// kernel: tpu_custom_call.1
$region0: #{tpu_custom_call.1}
  #allocation0 [shape = 'u32[]', space=smem, size = 0x4, offset = 0x4, fixed_abs, tag = 'smem constant byte address 0x4 - core index']
  #allocation1 [shape = 'u32[144,128]{1,0:T(1,128)}', space=vmem, size = 0x12000, scoped, tag = 'internal scratch']
  %s0 = inlined_call_operand.hbm [shape: f32[256,128], index: 0, kind: input, shape index: {}]
  %s1 = inlined_call_operand.hbm [shape: f32[128,384], index: 1, kind: input, shape index: {}]
  %s2 = inlined_call_operand.hbm [shape: bf16[3,256,128], index: 2, kind: output, shape index: {}]
  %s3 = sld [smem:[#allocation0]]
  $region26: #{tpu_custom_call.1} parent=0
    _
  %s5 = ssub.s32 1, %s3
  %s6 = scalar_select 0, %s5, %s3
  $region1: #{tpu_custom_call.1} parent=0
    #allocation2 [shape = 'u8[131072]{0}', space=vmem, size = 0x20000, scoped, tag = 'input window, operand 0, single buffered']
    #allocation3 [shape = 's32[1]{0}', space=sflag, size = 0x4, scoped, tag = 'scoped memory for tpu_custom_call.1']
    #allocation4 [shape = 's32[1]{0}', space=sflag, size = 0x4, scoped, tag = 'scoped memory for tpu_custom_call.1']
    #allocation5 [shape = 'u8[196608]{0}', space=vmem, size = 0x30000, scoped, tag = 'input window, operand 1, single buffered']
    #allocation6 [shape = 's32[1]{0}', space=sflag, size = 0x4, scoped, tag = 'scoped memory for tpu_custom_call.1']
    #allocation7 [shape = 'u8[196608]{0}', space=vmem, size = 0x30000, scoped, tag = 'output window, operand 0, single buffered']
    %7 = vsyncpa [#allocation3], 0
    %8 = vsyncpa [#allocation6], 0
    %9 = vsyncpa [#allocation4], 0
    // Predicated region
    $region2: #{tpu_custom_call.1} parent=1 // pred_check
      _
    $region3: #{tpu_custom_call.1} parent=1 // pred_check_branch
      %11 = sbr.rel (0) target = $region5
    $region4: #{tpu_custom_call.1} parent=1 // pred_region
      %s13 = ssub.s32 4096, 4096
      %14 = vsyncadd [#allocation3], %s13
      %s15 = sshll.u32 [#allocation2], 4
      %s16 = int_to_ptr.vmem [resolvable:$true] %s15
      %21 = dma.hbm_to_vmem [thread:$0]  %s0, 4096, %s16, [#allocation3], 128, 128, 8
    $region5: #{tpu_custom_call.1} parent=1 // pred_fallthru
      _
    // Predicated region
    $region6: #{tpu_custom_call.1} parent=1 // pred_check
      _
    $region7: #{tpu_custom_call.1} parent=1 // pred_check_branch
      %23 = sbr.rel (0) target = $region9
    $region8: #{tpu_custom_call.1} parent=1 // pred_region
      %s25 = ssub.s32 6144, 6144
      %26 = vsyncadd [#allocation6], %s25
      %s27 = sshll.u32 [#allocation5], 4
      %s28 = int_to_ptr.vmem [resolvable:$true] %s27
      %33 = dma.hbm_to_vmem [thread:$0]  %s1, 6144, %s28, [#allocation6], 384, 384, 24
    $region9: #{tpu_custom_call.1} parent=1 // pred_fallthru
      _
    // Predicated region
    $region10: #{tpu_custom_call.1} parent=1 // pred_check
      _
    $region11: #{tpu_custom_call.1} parent=1 // pred_check_branch
      %35 = sbr.rel (0) target = $region13
    $region12: #{tpu_custom_call.1} parent=1 // pred_region
      %36 = dma.done [#allocation3], 4096
    $region13: #{tpu_custom_call.1} parent=1 // pred_fallthru
      _
    // Predicated region
    $region14: #{tpu_custom_call.1} parent=1 // pred_check
      _
    $region15: #{tpu_custom_call.1} parent=1 // pred_check_branch
      %38 = sbr.rel (0) target = $region17
    $region16: #{tpu_custom_call.1} parent=1 // pred_region
      %39 = dma.done [#allocation6], 6144
    $region17: #{tpu_custom_call.1} parent=1 // pred_fallthru
      _
    %v40 = vld [vmem:[#allocation2] sm:$0xff]
    %v41 = vld [vmem:[#allocation2 + $0x8] sm:$0xff]
    %v42 = vld [vmem:[#allocation2 + $0x10] sm:$0xff]
    %v43 = vld [vmem:[#allocation2 + $0x18] sm:$0xff]
    %v44 = vld [vmem:[#allocation2 + $0x20] sm:$0xff]
    %v45 = vld [vmem:[#allocation2 + $0x28] sm:$0xff]
    %v46 = vld [vmem:[#allocation2 + $0x30] sm:$0xff]
    %v47 = vld [vmem:[#allocation2 + $0x38] sm:$0xff]
    %v48 = vld [vmem:[#allocation2 + $0x40] sm:$0xff]
    %v49 = vld [vmem:[#allocation2 + $0x48] sm:$0xff]
    %v50 = vld [vmem:[#allocation2 + $0x50] sm:$0xff]
    %v51 = vld [vmem:[#allocation2 + $0x58] sm:$0xff]
    %v52 = vld [vmem:[#allocation2 + $0x60] sm:$0xff]
    %v53 = vld [vmem:[#allocation2 + $0x68] sm:$0xff]
    %v54 = vld [vmem:[#allocation2 + $0x70] sm:$0xff]
    %v55 = vld [vmem:[#allocation2 + $0x78] sm:$0xff]
    %v56 = vld [vmem:[#allocation2 + $0x80] sm:$0xff]
    %v57 = vld [vmem:[#allocation2 + $0x88] sm:$0xff]
    %v58 = vld [vmem:[#allocation2 + $0x90] sm:$0xff]
    %v59 = vld [vmem:[#allocation2 + $0x98] sm:$0xff]
    %v60 = vld [vmem:[#allocation2 + $0xa0] sm:$0xff]
    %v61 = vld [vmem:[#allocation2 + $0xa8] sm:$0xff]
    %v62 = vld [vmem:[#allocation2 + $0xb0] sm:$0xff]
    %v63 = vld [vmem:[#allocation2 + $0xb8] sm:$0xff]
    %v64 = vld [vmem:[#allocation2 + $0xc0] sm:$0xff]
    %v65 = vld [vmem:[#allocation2 + $0xc8] sm:$0xff]
    %v66 = vld [vmem:[#allocation2 + $0xd0] sm:$0xff]
    %v67 = vld [vmem:[#allocation2 + $0xd8] sm:$0xff]
    %v68 = vld [vmem:[#allocation2 + $0xe0] sm:$0xff]
    %v69 = vld [vmem:[#allocation2 + $0xe8] sm:$0xff]
    %v70 = vld [vmem:[#allocation2 + $0xf0] sm:$0xff]
    %v71 = vld [vmem:[#allocation2 + $0xf8] sm:$0xff]
    %v72 = vld [vmem:[#allocation5] sm:$0xff]
    %v73 = vld [vmem:[#allocation5 + $0x8] sm:$0xff]
    %v74 = vld [vmem:[#allocation5 + $0x10] sm:$0xff]
    %v75 = vld [vmem:[#allocation5 + $0x18] sm:$0xff]
    %v76 = vld [vmem:[#allocation5 + $0x20] sm:$0xff]
    %v77 = vld [vmem:[#allocation5 + $0x28] sm:$0xff]
    %v78 = vld [vmem:[#allocation5 + $0x30] sm:$0xff]
    %v79 = vld [vmem:[#allocation5 + $0x38] sm:$0xff]
    %v80 = vld [vmem:[#allocation5 + $0x40] sm:$0xff]
    %v81 = vld [vmem:[#allocation5 + $0x48] sm:$0xff]
    %v82 = vld [vmem:[#allocation5 + $0x50] sm:$0xff]
    %v83 = vld [vmem:[#allocation5 + $0x58] sm:$0xff]
    %v84 = vld [vmem:[#allocation5 + $0x60] sm:$0xff]
    %v85 = vld [vmem:[#allocation5 + $0x68] sm:$0xff]
    %v86 = vld [vmem:[#allocation5 + $0x70] sm:$0xff]
    %v87 = vld [vmem:[#allocation5 + $0x78] sm:$0xff]
    %v88 = vld [vmem:[#allocation5 + $0x80] sm:$0xff]
    %v89 = vld [vmem:[#allocation5 + $0x88] sm:$0xff]
    %v90 = vld [vmem:[#allocation5 + $0x90] sm:$0xff]
    %v91 = vld [vmem:[#allocation5 + $0x98] sm:$0xff]
    %v92 = vld [vmem:[#allocation5 + $0xa0] sm:$0xff]
    %v93 = vld [vmem:[#allocation5 + $0xa8] sm:$0xff]
    %v94 = vld [vmem:[#allocation5 + $0xb0] sm:$0xff]
    %v95 = vld [vmem:[#allocation5 + $0xb8] sm:$0xff]
    %v96 = vld [vmem:[#allocation5 + $0xc0] sm:$0xff]
    %v97 = vld [vmem:[#allocation5 + $0xc8] sm:$0xff]
    %v98 = vld [vmem:[#allocation5 + $0xd0] sm:$0xff]
    %v99 = vld [vmem:[#allocation5 + $0xd8] sm:$0xff]
    %v100 = vld [vmem:[#allocation5 + $0xe0] sm:$0xff]
    %v101 = vld [vmem:[#allocation5 + $0xe8] sm:$0xff]
    %v102 = vld [vmem:[#allocation5 + $0xf0] sm:$0xff]
    %v103 = vld [vmem:[#allocation5 + $0xf8] sm:$0xff]
    %v104 = vld [vmem:[#allocation5 + $0x100] sm:$0xff]
    %v105 = vld [vmem:[#allocation5 + $0x108] sm:$0xff]
    %v106 = vld [vmem:[#allocation5 + $0x110] sm:$0xff]
    %v107 = vld [vmem:[#allocation5 + $0x118] sm:$0xff]
    %v108 = vld [vmem:[#allocation5 + $0x120] sm:$0xff]
    %v109 = vld [vmem:[#allocation5 + $0x128] sm:$0xff]
    %v110 = vld [vmem:[#allocation5 + $0x130] sm:$0xff]
    %v111 = vld [vmem:[#allocation5 + $0x138] sm:$0xff]
    %v112 = vld [vmem:[#allocation5 + $0x140] sm:$0xff]
    %v113 = vld [vmem:[#allocation5 + $0x148] sm:$0xff]
    %v114 = vld [vmem:[#allocation5 + $0x150] sm:$0xff]
    %v115 = vld [vmem:[#allocation5 + $0x158] sm:$0xff]
    %v116 = vld [vmem:[#allocation5 + $0x160] sm:$0xff]
    %v117 = vld [vmem:[#allocation5 + $0x168] sm:$0xff]
    %v118 = vld [vmem:[#allocation5 + $0x170] sm:$0xff]
    %v119 = vld [vmem:[#allocation5 + $0x178] sm:$0xff]
    %120 = vmatprep.subr.mxu0 %v118
    %121 = vmatpush1.msra.mxu0 %v117
    %122 = vmatprep.subr.mxu0 %v115
    %123 = vmatpush1.msra.mxu0 %v114
    %124 = vmatprep.subr.mxu0 %v112
    %125 = vmatpush1.msra.mxu0 %v111
    %126 = vmatprep.subr.mxu0 %v109
    %127 = vmatpush1.msra.mxu0 %v108
    %128 = vmatprep.subr.mxu0 %v106
    %129 = vmatpush1.msra.mxu0 %v105
    %130 = vmatprep.subr.mxu0 %v103
    %131 = vmatpush1.msra.mxu0 %v102
    %132 = vmatprep.subr.mxu0 %v100
    %133 = vmatpush1.msra.mxu0 %v99
    %134 = vmatprep.subr.mxu0 %v97
    %135 = vmatpush1.msra.mxu0 %v96
    %136 = vmatprep.subr.mxu0 %v94
    %137 = vmatpush1.msra.mxu0 %v93
    %138 = vmatprep.subr.mxu0 %v91
    %139 = vmatpush1.msra.mxu0 %v90
    %140 = vmatprep.subr.mxu0 %v88
    %141 = vmatpush1.msra.mxu0 %v87
    %142 = vmatprep.subr.mxu0 %v85
    %143 = vmatpush1.msra.mxu0 %v84
    %144 = vmatprep.subr.mxu0 %v82
    %145 = vmatpush1.msra.mxu0 %v81
    %146 = vmatprep.subr.mxu0 %v79
    %147 = vmatpush1.msra.mxu0 %v78
    %148 = vmatprep.subr.mxu0 %v76
    %149 = vmatpush1.msra.mxu0 %v75
    %150 = vmatprep.subr.mxu0 %v73
    %151 = vmatpush1.msra.mxu0 %v72
    %152 = vmatprep.subr.mxu0 0.0
    %153 = vmatpush2.msra.mxu0 0.0
    %154 = vmatprep.subr.mxu0 0.0
    %155 = vmatpush2.msra.mxu0 0.0
    %156 = vmatprep.subr.mxu0 0.0
    %157 = vmatpush2.msra.mxu0 0.0
    %158 = vmatprep.subr.mxu0 0.0
    %159 = vmatpush2.msra.mxu0 0.0
    %160 = vmatprep.subr.mxu0 0.0
    %161 = vmatpush2.msra.mxu0 0.0
    %162 = vmatprep.subr.mxu0 0.0
    %163 = vmatpush2.msra.mxu0 0.0
    %164 = vmatprep.subr.mxu0 0.0
    %165 = vmatpush2.msra.mxu0 0.0
    %166 = vmatprep.subr.mxu0 0.0
    %167 = vmatpush2.msra.mxu0 0.0
    %168 = vmatprep.subr.mxu0 0.0
    %169 = vmatpush2.msra.mxu0 0.0
    %170 = vmatprep.subr.mxu0 0.0
    %171 = vmatpush2.msra.mxu0 0.0
    %172 = vmatprep.subr.mxu0 0.0
    %173 = vmatpush2.msra.mxu0 0.0
    %174 = vmatprep.subr.mxu0 0.0
    %175 = vmatpush2.msra.mxu0 0.0
    %176 = vmatprep.subr.mxu0 0.0
    %177 = vmatpush2.msra.mxu0 0.0
    %178 = vmatprep.subr.mxu0 0.0
    %179 = vmatpush2.msra.mxu0 0.0
    %180 = vmatprep.subr.mxu0 0.0
    %181 = vmatpush2.msra.mxu0 0.0
    %182 = vmatprep.subr.mxu0 0.0
    %183 = vmatpush2.msra.mxu0 0.0
    %184 = vmatprep.mubr.f32.mxu0 0.0
    %185 = vmatmul.mubr.f32.gmra.mxu0 %v40
    %v186 = vpop.f32.mrf.mxu0
    %v187 = vadd.f32 0.0, %v186
    %v188 = vpop.f32.mrf.mxu0
    %v189 = vadd.f32 0.0, %v188
    %190 = vmatprep.mubr.f32.mxu0 0.0
    %191 = vmatmul.mubr.f32.gmra.mxu0 %v41
    %v192 = vpop.f32.mrf.mxu0
    %v193 = vadd.f32 0.0, %v192
    %v194 = vpop.f32.mrf.mxu0
    %v195 = vadd.f32 0.0, %v194
    %196 = vmatprep.mubr.f32.mxu0 0.0
    %197 = vmatmul.mubr.f32.gmra.mxu0 %v42
    %v198 = vpop.f32.mrf.mxu0
    %v199 = vadd.f32 0.0, %v198
    %v200 = vpop.f32.mrf.mxu0
    %v201 = vadd.f32 0.0, %v200
    %202 = vmatprep.mubr.f32.mxu0 0.0
    %203 = vmatmul.mubr.f32.gmra.mxu0 %v43
    %v204 = vpop.f32.mrf.mxu0
    %v205 = vadd.f32 0.0, %v204
    %v206 = vpop.f32.mrf.mxu0
    %v207 = vadd.f32 0.0, %v206
    %208 = vmatprep.mubr.f32.mxu0 0.0
    %209 = vmatmul.mubr.f32.gmra.mxu0 %v44
    %v210 = vpop.f32.mrf.mxu0
    %v211 = vadd.f32 0.0, %v210
    %v212 = vpop.f32.mrf.mxu0
    %v213 = vadd.f32 0.0, %v212
    %214 = vmatprep.mubr.f32.mxu0 0.0
    %215 = vmatmul.mubr.f32.gmra.mxu0 %v45
    %v216 = vpop.f32.mrf.mxu0
    %v217 = vadd.f32 0.0, %v216
    %v218 = vpop.f32.mrf.mxu0
    %v219 = vadd.f32 0.0, %v218
    %220 = vmatprep.mubr.f32.mxu0 0.0
    %221 = vmatmul.mubr.f32.gmra.mxu0 %v46
    %v222 = vpop.f32.mrf.mxu0
    %v223 = vadd.f32 0.0, %v222
    %v224 = vpop.f32.mrf.mxu0
    %v225 = vadd.f32 0.0, %v224
    %226 = vmatprep.mubr.f32.mxu0 0.0
    %227 = vmatmul.mubr.f32.gmra.mxu0 %v47
    %v228 = vpop.f32.mrf.mxu0
    %v229 = vadd.f32 0.0, %v228
    %v230 = vpop.f32.mrf.mxu0
    %v231 = vadd.f32 0.0, %v230
    %232 = vmatprep.mubr.f32.mxu0 0.0
    %233 = vmatmul.mubr.f32.gmra.mxu0 %v48
    %v234 = vpop.f32.mrf.mxu0
    %v235 = vadd.f32 0.0, %v234
    %v236 = vpop.f32.mrf.mxu0
    %v237 = vadd.f32 0.0, %v236
    %238 = vmatprep.mubr.f32.mxu0 0.0
    %239 = vmatmul.mubr.f32.gmra.mxu0 %v49
    %v240 = vpop.f32.mrf.mxu0
    %v241 = vadd.f32 0.0, %v240
    %v242 = vpop.f32.mrf.mxu0
    %v243 = vadd.f32 0.0, %v242
    %244 = vmatprep.mubr.f32.mxu0 0.0
    %245 = vmatmul.mubr.f32.gmra.mxu0 %v50
    %v246 = vpop.f32.mrf.mxu0
    %v247 = vadd.f32 0.0, %v246
    %v248 = vpop.f32.mrf.mxu0
    %v249 = vadd.f32 0.0, %v248
    %250 = vmatprep.mubr.f32.mxu0 0.0
    %251 = vmatmul.mubr.f32.gmra.mxu0 %v51
    %v252 = vpop.f32.mrf.mxu0
    %v253 = vadd.f32 0.0, %v252
    %v254 = vpop.f32.mrf.mxu0
    %v255 = vadd.f32 0.0, %v254
    %256 = vmatprep.mubr.f32.mxu0 0.0
    %257 = vmatmul.mubr.f32.gmra.mxu0 %v52
    %v258 = vpop.f32.mrf.mxu0
    %v259 = vadd.f32 0.0, %v258
    %v260 = vpop.f32.mrf.mxu0
    %v261 = vadd.f32 0.0, %v260
    %262 = vmatprep.mubr.f32.mxu0 0.0
    %263 = vmatmul.mubr.f32.gmra.mxu0 %v53
    %v264 = vpop.f32.mrf.mxu0
    %v265 = vadd.f32 0.0, %v264
    %v266 = vpop.f32.mrf.mxu0
    %v267 = vadd.f32 0.0, %v266
    %268 = vmatprep.mubr.f32.mxu0 0.0
    %269 = vmatmul.mubr.f32.gmra.mxu0 %v54
    %v270 = vpop.f32.mrf.mxu0
    %v271 = vadd.f32 0.0, %v270
    %v272 = vpop.f32.mrf.mxu0
    %v273 = vadd.f32 0.0, %v272
    %274 = vmatprep.mubr.f32.mxu0 0.0
    %275 = vmatmul.mubr.f32.gmra.mxu0 %v55
    %v276 = vpop.f32.mrf.mxu0
    %v277 = vadd.f32 0.0, %v276
    %v278 = vpop.f32.mrf.mxu0
    %v279 = vadd.f32 0.0, %v278
    %280 = vmatprep.mubr.f32.mxu0 0.0
    %281 = vmatmul.mubr.f32.gmra.mxu0 %v56
    %v282 = vpop.f32.mrf.mxu0
    %v283 = vadd.f32 0.0, %v282
    %v284 = vpop.f32.mrf.mxu0
    %v285 = vadd.f32 0.0, %v284
    %286 = vmatprep.mubr.f32.mxu0 0.0
    %287 = vmatmul.mubr.f32.gmra.mxu0 %v57
    %v288 = vpop.f32.mrf.mxu0
    %v289 = vadd.f32 0.0, %v288
    %v290 = vpop.f32.mrf.mxu0
    %v291 = vadd.f32 0.0, %v290
    %292 = vmatprep.mubr.f32.mxu0 0.0
    %293 = vmatmul.mubr.f32.gmra.mxu0 %v58
    %v294 = vpop.f32.mrf.mxu0
    %v295 = vadd.f32 0.0, %v294
    %v296 = vpop.f32.mrf.mxu0
    %v297 = vadd.f32 0.0, %v296
    %298 = vmatprep.mubr.f32.mxu0 0.0
    %299 = vmatmul.mubr.f32.gmra.mxu0 %v59
    %v300 = vpop.f32.mrf.mxu0
    %v301 = vadd.f32 0.0, %v300
    %v302 = vpop.f32.mrf.mxu0
    %v303 = vadd.f32 0.0, %v302
    %304 = vmatprep.mubr.f32.mxu0 0.0
    %305 = vmatmul.mubr.f32.gmra.mxu0 %v60
    %v306 = vpop.f32.mrf.mxu0
    %v307 = vadd.f32 0.0, %v306
    %v308 = vpop.f32.mrf.mxu0
    %v309 = vadd.f32 0.0, %v308
    %310 = vmatprep.mubr.f32.mxu0 0.0
    %311 = vmatmul.mubr.f32.gmra.mxu0 %v61
    %v312 = vpop.f32.mrf.mxu0
    %v313 = vadd.f32 0.0, %v312
    %v314 = vpop.f32.mrf.mxu0
    %v315 = vadd.f32 0.0, %v314
    %316 = vmatprep.mubr.f32.mxu0 0.0
    %317 = vmatmul.mubr.f32.gmra.mxu0 %v62
    %v318 = vpop.f32.mrf.mxu0
    %v319 = vadd.f32 0.0, %v318
    %v320 = vpop.f32.mrf.mxu0
    %v321 = vadd.f32 0.0, %v320
    %322 = vmatprep.mubr.f32.mxu0 0.0
    %323 = vmatmul.mubr.f32.gmra.mxu0 %v63
    %v324 = vpop.f32.mrf.mxu0
    %v325 = vadd.f32 0.0, %v324
    %v326 = vpop.f32.mrf.mxu0
    %v327 = vadd.f32 0.0, %v326
    %328 = vmatprep.mubr.f32.mxu0 0.0
    %329 = vmatmul.mubr.f32.gmra.mxu0 %v64
    %v330 = vpop.f32.mrf.mxu0
    %v331 = vadd.f32 0.0, %v330
    %v332 = vpop.f32.mrf.mxu0
    %v333 = vadd.f32 0.0, %v332
    %334 = vmatprep.mubr.f32.mxu0 0.0
    %335 = vmatmul.mubr.f32.gmra.mxu0 %v65
    %v336 = vpop.f32.mrf.mxu0
    %v337 = vadd.f32 0.0, %v336
    %v338 = vpop.f32.mrf.mxu0
    %v339 = vadd.f32 0.0, %v338
    %340 = vmatprep.mubr.f32.mxu0 0.0
    %341 = vmatmul.mubr.f32.gmra.mxu0 %v66
    %v342 = vpop.f32.mrf.mxu0
    %v343 = vadd.f32 0.0, %v342
    %v344 = vpop.f32.mrf.mxu0
    %v345 = vadd.f32 0.0, %v344
    %346 = vmatprep.mubr.f32.mxu0 0.0
    %347 = vmatmul.mubr.f32.gmra.mxu0 %v67
    %v348 = vpop.f32.mrf.mxu0
    %v349 = vadd.f32 0.0, %v348
    %v350 = vpop.f32.mrf.mxu0
    %v351 = vadd.f32 0.0, %v350
    %352 = vmatprep.mubr.f32.mxu0 0.0
    %353 = vmatmul.mubr.f32.gmra.mxu0 %v68
    %v354 = vpop.f32.mrf.mxu0
    %v355 = vadd.f32 0.0, %v354
    %v356 = vpop.f32.mrf.mxu0
    %v357 = vadd.f32 0.0, %v356
    %358 = vmatprep.mubr.f32.mxu0 0.0
    %359 = vmatmul.mubr.f32.gmra.mxu0 %v69
    %v360 = vpop.f32.mrf.mxu0
    %v361 = vadd.f32 0.0, %v360
    %v362 = vpop.f32.mrf.mxu0
    %v363 = vadd.f32 0.0, %v362
    %364 = vmatprep.mubr.f32.mxu0 0.0
    %365 = vmatmul.mubr.f32.gmra.mxu0 %v70
    %v366 = vpop.f32.mrf.mxu0
    %v367 = vadd.f32 0.0, %v366
    %v368 = vpop.f32.mrf.mxu0
    %v369 = vadd.f32 0.0, %v368
    %370 = vmatprep.mubr.f32.mxu0 0.0
    %371 = vmatmul.mubr.f32.gmra.mxu0 %v71
    %v372 = vpop.f32.mrf.mxu0
    %v373 = vadd.f32 0.0, %v372
    %v374 = vpop.f32.mrf.mxu0
    %v375 = vadd.f32 0.0, %v374
    %376 = vdwg.mxu0
    %377 = vmatprep.subr.mxu0 0.0
    %378 = vmatpush1.msra.mxu0 %v119
    %379 = vmatprep.subr.mxu0 0.0
    %380 = vmatpush1.msra.mxu0 %v116
    %381 = vmatprep.subr.mxu0 0.0
    %382 = vmatpush1.msra.mxu0 %v113
    %383 = vmatprep.subr.mxu0 0.0
    %384 = vmatpush1.msra.mxu0 %v110
    %385 = vmatprep.subr.mxu0 0.0
    %386 = vmatpush1.msra.mxu0 %v107
    %387 = vmatprep.subr.mxu0 0.0
    %388 = vmatpush1.msra.mxu0 %v104
    %389 = vmatprep.subr.mxu0 0.0
    %390 = vmatpush1.msra.mxu0 %v101
    %391 = vmatprep.subr.mxu0 0.0
    %392 = vmatpush1.msra.mxu0 %v98
    %393 = vmatprep.subr.mxu0 0.0
    %394 = vmatpush1.msra.mxu0 %v95
    %395 = vmatprep.subr.mxu0 0.0
    %396 = vmatpush1.msra.mxu0 %v92
    %397 = vmatprep.subr.mxu0 0.0
    %398 = vmatpush1.msra.mxu0 %v89
    %399 = vmatprep.subr.mxu0 0.0
    %400 = vmatpush1.msra.mxu0 %v86
    %401 = vmatprep.subr.mxu0 0.0
    %402 = vmatpush1.msra.mxu0 %v83
    %403 = vmatprep.subr.mxu0 0.0
    %404 = vmatpush1.msra.mxu0 %v80
    %405 = vmatprep.subr.mxu0 0.0
    %406 = vmatpush1.msra.mxu0 %v77
    %407 = vmatprep.subr.mxu0 0.0
    %408 = vmatpush1.msra.mxu0 %v74
    %409 = vmatprep.subr.mxu0 0.0
    %410 = vmatpush2.msra.mxu0 0.0
    %411 = vmatprep.subr.mxu0 0.0
    %412 = vmatpush2.msra.mxu0 0.0
    %413 = vmatprep.subr.mxu0 0.0
    %414 = vmatpush2.msra.mxu0 0.0
    %415 = vmatprep.subr.mxu0 0.0
    %416 = vmatpush2.msra.mxu0 0.0
    %417 = vmatprep.subr.mxu0 0.0
    %418 = vmatpush2.msra.mxu0 0.0
    %419 = vmatprep.subr.mxu0 0.0
    %420 = vmatpush2.msra.mxu0 0.0
    %421 = vmatprep.subr.mxu0 0.0
    %422 = vmatpush2.msra.mxu0 0.0
    %423 = vmatprep.subr.mxu0 0.0
    %424 = vmatpush2.msra.mxu0 0.0
    %425 = vmatprep.subr.mxu0 0.0
    %426 = vmatpush2.msra.mxu0 0.0
    %427 = vmatprep.subr.mxu0 0.0
    %428 = vmatpush2.msra.mxu0 0.0
    %429 = vmatprep.subr.mxu0 0.0
    %430 = vmatpush2.msra.mxu0 0.0
    %431 = vmatprep.subr.mxu0 0.0
    %432 = vmatpush2.msra.mxu0 0.0
    %433 = vmatprep.subr.mxu0 0.0
    %434 = vmatpush2.msra.mxu0 0.0
    %435 = vmatprep.subr.mxu0 0.0
    %436 = vmatpush2.msra.mxu0 0.0
    %437 = vmatprep.subr.mxu0 0.0
    %438 = vmatpush2.msra.mxu0 0.0
    %439 = vmatprep.subr.mxu0 0.0
    %440 = vmatpush2.msra.mxu0 0.0
    %441 = vmatprep.mubr.f32.mxu0 0.0
    %442 = vmatmul.mubr.f32.gmra.mxu0 %v40
    %v443 = vpop.f32.mrf.mxu0
    %v444 = vadd.f32 0.0, %v443
    %v445 = vpop.f32.mrf.mxu0
    %446 = vmatprep.mubr.f32.mxu0 0.0
    %447 = vmatmul.mubr.f32.gmra.mxu0 %v41
    %v448 = vpop.f32.mrf.mxu0
    %v449 = vadd.f32 0.0, %v448
    %v450 = vpop.f32.mrf.mxu0
    %451 = vmatprep.mubr.f32.mxu0 0.0
    %452 = vmatmul.mubr.f32.gmra.mxu0 %v42
    %v453 = vpop.f32.mrf.mxu0
    %v454 = vadd.f32 0.0, %v453
    %v455 = vpop.f32.mrf.mxu0
    %456 = vmatprep.mubr.f32.mxu0 0.0
    %457 = vmatmul.mubr.f32.gmra.mxu0 %v43
    %v458 = vpop.f32.mrf.mxu0
    %v459 = vadd.f32 0.0, %v458
    %v460 = vpop.f32.mrf.mxu0
    %461 = vmatprep.mubr.f32.mxu0 0.0
    %462 = vmatmul.mubr.f32.gmra.mxu0 %v44
    %v463 = vpop.f32.mrf.mxu0
    %v464 = vadd.f32 0.0, %v463
    %v465 = vpop.f32.mrf.mxu0
    %466 = vmatprep.mubr.f32.mxu0 0.0
    %467 = vmatmul.mubr.f32.gmra.mxu0 %v45
    %v468 = vpop.f32.mrf.mxu0
    %v469 = vadd.f32 0.0, %v468
    %v470 = vpop.f32.mrf.mxu0
    %471 = vmatprep.mubr.f32.mxu0 0.0
    %472 = vmatmul.mubr.f32.gmra.mxu0 %v46
    %v473 = vpop.f32.mrf.mxu0
    %v474 = vadd.f32 0.0, %v473
    %v475 = vpop.f32.mrf.mxu0
    %476 = vmatprep.mubr.f32.mxu0 0.0
    %477 = vmatmul.mubr.f32.gmra.mxu0 %v47
    %v478 = vpop.f32.mrf.mxu0
    %v479 = vadd.f32 0.0, %v478
    %v480 = vpop.f32.mrf.mxu0
    %481 = vmatprep.mubr.f32.mxu0 0.0
    %482 = vmatmul.mubr.f32.gmra.mxu0 %v48
    %v483 = vpop.f32.mrf.mxu0
    %v484 = vadd.f32 0.0, %v483
    %v485 = vpop.f32.mrf.mxu0
    %486 = vmatprep.mubr.f32.mxu0 0.0
    %487 = vmatmul.mubr.f32.gmra.mxu0 %v49
    %v488 = vpop.f32.mrf.mxu0
    %v489 = vadd.f32 0.0, %v488
    %v490 = vpop.f32.mrf.mxu0
    %491 = vmatprep.mubr.f32.mxu0 0.0
    %492 = vmatmul.mubr.f32.gmra.mxu0 %v50
    %v493 = vpop.f32.mrf.mxu0
    %v494 = vadd.f32 0.0, %v493
    %v495 = vpop.f32.mrf.mxu0
    %496 = vmatprep.mubr.f32.mxu0 0.0
    %497 = vmatmul.mubr.f32.gmra.mxu0 %v51
    %v498 = vpop.f32.mrf.mxu0
    %v499 = vadd.f32 0.0, %v498
    %v500 = vpop.f32.mrf.mxu0
    %501 = vmatprep.mubr.f32.mxu0 0.0
    %502 = vmatmul.mubr.f32.gmra.mxu0 %v52
    %v503 = vpop.f32.mrf.mxu0
    %v504 = vadd.f32 0.0, %v503
    %v505 = vpop.f32.mrf.mxu0
    %506 = vmatprep.mubr.f32.mxu0 0.0
    %507 = vmatmul.mubr.f32.gmra.mxu0 %v53
    %v508 = vpop.f32.mrf.mxu0
    %v509 = vadd.f32 0.0, %v508
    %v510 = vpop.f32.mrf.mxu0
    %511 = vmatprep.mubr.f32.mxu0 0.0
    %512 = vmatmul.mubr.f32.gmra.mxu0 %v54
    %v513 = vpop.f32.mrf.mxu0
    %v514 = vadd.f32 0.0, %v513
    %v515 = vpop.f32.mrf.mxu0
    %516 = vmatprep.mubr.f32.mxu0 0.0
    %517 = vmatmul.mubr.f32.gmra.mxu0 %v55
    %v518 = vpop.f32.mrf.mxu0
    %v519 = vadd.f32 0.0, %v518
    %v520 = vpop.f32.mrf.mxu0
    %521 = vmatprep.mubr.f32.mxu0 0.0
    %522 = vmatmul.mubr.f32.gmra.mxu0 %v56
    %v523 = vpop.f32.mrf.mxu0
    %v524 = vadd.f32 0.0, %v523
    %v525 = vpop.f32.mrf.mxu0
    %526 = vmatprep.mubr.f32.mxu0 0.0
    %527 = vmatmul.mubr.f32.gmra.mxu0 %v57
    %v528 = vpop.f32.mrf.mxu0
    %v529 = vadd.f32 0.0, %v528
    %v530 = vpop.f32.mrf.mxu0
    %531 = vmatprep.mubr.f32.mxu0 0.0
    %532 = vmatmul.mubr.f32.gmra.mxu0 %v58
    %v533 = vpop.f32.mrf.mxu0
    %v534 = vadd.f32 0.0, %v533
    %v535 = vpop.f32.mrf.mxu0
    %536 = vmatprep.mubr.f32.mxu0 0.0
    %537 = vmatmul.mubr.f32.gmra.mxu0 %v59
    %v538 = vpop.f32.mrf.mxu0
    %v539 = vadd.f32 0.0, %v538
    %v540 = vpop.f32.mrf.mxu0
    %541 = vmatprep.mubr.f32.mxu0 0.0
    %542 = vmatmul.mubr.f32.gmra.mxu0 %v60
    %v543 = vpop.f32.mrf.mxu0
    %v544 = vadd.f32 0.0, %v543
    %v545 = vpop.f32.mrf.mxu0
    %546 = vmatprep.mubr.f32.mxu0 0.0
    %547 = vmatmul.mubr.f32.gmra.mxu0 %v61
    %v548 = vpop.f32.mrf.mxu0
    %v549 = vadd.f32 0.0, %v548
    %v550 = vpop.f32.mrf.mxu0
    %551 = vmatprep.mubr.f32.mxu0 0.0
    %552 = vmatmul.mubr.f32.gmra.mxu0 %v62
    %v553 = vpop.f32.mrf.mxu0
    %v554 = vadd.f32 0.0, %v553
    %v555 = vpop.f32.mrf.mxu0
    %556 = vmatprep.mubr.f32.mxu0 0.0
    %557 = vmatmul.mubr.f32.gmra.mxu0 %v63
    %v558 = vpop.f32.mrf.mxu0
    %v559 = vadd.f32 0.0, %v558
    %v560 = vpop.f32.mrf.mxu0
    %561 = vmatprep.mubr.f32.mxu0 0.0
    %562 = vmatmul.mubr.f32.gmra.mxu0 %v64
    %v563 = vpop.f32.mrf.mxu0
    %v564 = vadd.f32 0.0, %v563
    %v565 = vpop.f32.mrf.mxu0
    %566 = vmatprep.mubr.f32.mxu0 0.0
    %567 = vmatmul.mubr.f32.gmra.mxu0 %v65
    %v568 = vpop.f32.mrf.mxu0
    %v569 = vadd.f32 0.0, %v568
    %v570 = vpop.f32.mrf.mxu0
    %571 = vmatprep.mubr.f32.mxu0 0.0
    %572 = vmatmul.mubr.f32.gmra.mxu0 %v66
    %v573 = vpop.f32.mrf.mxu0
    %v574 = vadd.f32 0.0, %v573
    %v575 = vpop.f32.mrf.mxu0
    %576 = vmatprep.mubr.f32.mxu0 0.0
    %577 = vmatmul.mubr.f32.gmra.mxu0 %v67
    %v578 = vpop.f32.mrf.mxu0
    %v579 = vadd.f32 0.0, %v578
    %v580 = vpop.f32.mrf.mxu0
    %581 = vmatprep.mubr.f32.mxu0 0.0
    %582 = vmatmul.mubr.f32.gmra.mxu0 %v68
    %v583 = vpop.f32.mrf.mxu0
    %v584 = vadd.f32 0.0, %v583
    %v585 = vpop.f32.mrf.mxu0
    %586 = vmatprep.mubr.f32.mxu0 0.0
    %587 = vmatmul.mubr.f32.gmra.mxu0 %v69
    %v588 = vpop.f32.mrf.mxu0
    %v589 = vadd.f32 0.0, %v588
    %v590 = vpop.f32.mrf.mxu0
    %591 = vmatprep.mubr.f32.mxu0 0.0
    %592 = vmatmul.mubr.f32.gmra.mxu0 %v70
    %v593 = vpop.f32.mrf.mxu0
    %v594 = vadd.f32 0.0, %v593
    %v595 = vpop.f32.mrf.mxu0
    %596 = vmatprep.mubr.f32.mxu0 0.0
    %597 = vmatmul.mubr.f32.gmra.mxu0 %v71
    %v598 = vpop.f32.mrf.mxu0
    %v599 = vadd.f32 0.0, %v598
    %v600 = vpop.f32.mrf.mxu0
    %601 = vdwg.mxu0
    %v602 = vpack.c.bf16 %v193, %v187
    %v603 = vpack.c.bf16 %v205, %v199
    %v604 = vpack.c.bf16 %v217, %v211
    %v605 = vpack.c.bf16 %v229, %v223
    %v606 = vpack.c.bf16 %v241, %v235
    %v607 = vpack.c.bf16 %v253, %v247
    %v608 = vpack.c.bf16 %v265, %v259
    %v609 = vpack.c.bf16 %v277, %v271
    %v610 = vpack.c.bf16 %v289, %v283
    %v611 = vpack.c.bf16 %v301, %v295
    %v612 = vpack.c.bf16 %v313, %v307
    %v613 = vpack.c.bf16 %v325, %v319
    %v614 = vpack.c.bf16 %v337, %v331
    %v615 = vpack.c.bf16 %v349, %v343
    %v616 = vpack.c.bf16 %v361, %v355
    %v617 = vpack.c.bf16 %v373, %v367
    %v634 = vunpack.c.l.b16 %v602
    %v635 = vunpack.c.h.b16 %v602
    %v636 = vunpack.c.l.b16 %v603
    %v637 = vunpack.c.h.b16 %v603
    %v638 = vunpack.c.l.b16 %v604
    %v639 = vunpack.c.h.b16 %v604
    %v640 = vunpack.c.l.b16 %v605
    %v641 = vunpack.c.h.b16 %v605
    %v642 = vunpack.c.l.b16 %v606
    %v643 = vunpack.c.h.b16 %v606
    %v644 = vunpack.c.l.b16 %v607
    %v645 = vunpack.c.h.b16 %v607
    %v646 = vunpack.c.l.b16 %v608
    %v647 = vunpack.c.h.b16 %v608
    %v648 = vunpack.c.l.b16 %v609
    %v649 = vunpack.c.h.b16 %v609
    %v650 = vunpack.c.l.b16 %v610
    %v651 = vunpack.c.h.b16 %v610
    %v652 = vunpack.c.l.b16 %v611
    %v653 = vunpack.c.h.b16 %v611
    %v654 = vunpack.c.l.b16 %v612
    %v655 = vunpack.c.h.b16 %v612
    %v656 = vunpack.c.l.b16 %v613
    %v657 = vunpack.c.h.b16 %v613
    %v658 = vunpack.c.l.b16 %v614
    %v659 = vunpack.c.h.b16 %v614
    %v660 = vunpack.c.l.b16 %v615
    %v661 = vunpack.c.h.b16 %v615
    %v662 = vunpack.c.l.b16 %v616
    %v663 = vunpack.c.h.b16 %v616
    %v664 = vunpack.c.l.b16 %v617
    %v665 = vunpack.c.h.b16 %v617
    %v666 = vpack.c.b16 %v634, %v634
    %v667 = vpack.c.b16 %v635, %v635
    %v668 = vpack.c.b16 %v636, %v636
    %v669 = vpack.c.b16 %v637, %v637
    %v670 = vpack.c.b16 %v638, %v638
    %v671 = vpack.c.b16 %v639, %v639
    %v672 = vpack.c.b16 %v640, %v640
    %v673 = vpack.c.b16 %v641, %v641
    %v674 = vpack.c.b16 %v642, %v642
    %v675 = vpack.c.b16 %v643, %v643
    %v676 = vpack.c.b16 %v644, %v644
    %v677 = vpack.c.b16 %v645, %v645
    %v678 = vpack.c.b16 %v646, %v646
    %v679 = vpack.c.b16 %v647, %v647
    %v680 = vpack.c.b16 %v648, %v648
    %v681 = vpack.c.b16 %v649, %v649
    %v682 = vpack.c.b16 %v650, %v650
    %v683 = vpack.c.b16 %v651, %v651
    %v684 = vpack.c.b16 %v652, %v652
    %v685 = vpack.c.b16 %v653, %v653
    %v686 = vpack.c.b16 %v654, %v654
    %v687 = vpack.c.b16 %v655, %v655
    %v688 = vpack.c.b16 %v656, %v656
    %v689 = vpack.c.b16 %v657, %v657
    %v690 = vpack.c.b16 %v658, %v658
    %v691 = vpack.c.b16 %v659, %v659
    %v692 = vpack.c.b16 %v660, %v660
    %v693 = vpack.c.b16 %v661, %v661
    %v694 = vpack.c.b16 %v662, %v662
    %v695 = vpack.c.b16 %v663, %v663
    %v696 = vpack.c.b16 %v664, %v664
    %v697 = vpack.c.b16 %v665, %v665
    %730 = vst [vmem:[#allocation7] sm:$0xf] %v666
    %731 = vst [vmem:[#allocation7 + $0x4] sm:$0xf] %v667
    %732 = vst [vmem:[#allocation7 + $0x8] sm:$0xf] %v668
    %733 = vst [vmem:[#allocation7 + $0xc] sm:$0xf] %v669
    %734 = vst [vmem:[#allocation7 + $0x10] sm:$0xf] %v670
    %735 = vst [vmem:[#allocation7 + $0x14] sm:$0xf] %v671
    %736 = vst [vmem:[#allocation7 + $0x18] sm:$0xf] %v672
    %737 = vst [vmem:[#allocation7 + $0x1c] sm:$0xf] %v673
    %738 = vst [vmem:[#allocation7 + $0x20] sm:$0xf] %v674
    %739 = vst [vmem:[#allocation7 + $0x24] sm:$0xf] %v675
    %740 = vst [vmem:[#allocation7 + $0x28] sm:$0xf] %v676
    %741 = vst [vmem:[#allocation7 + $0x2c] sm:$0xf] %v677
    %742 = vst [vmem:[#allocation7 + $0x30] sm:$0xf] %v678
    %743 = vst [vmem:[#allocation7 + $0x34] sm:$0xf] %v679
    %744 = vst [vmem:[#allocation7 + $0x38] sm:$0xf] %v680
    %745 = vst [vmem:[#allocation7 + $0x3c] sm:$0xf] %v681
    %746 = vst [vmem:[#allocation7 + $0x40] sm:$0xf] %v682
    %747 = vst [vmem:[#allocation7 + $0x44] sm:$0xf] %v683
    %748 = vst [vmem:[#allocation7 + $0x48] sm:$0xf] %v684
    %749 = vst [vmem:[#allocation7 + $0x4c] sm:$0xf] %v685
    %750 = vst [vmem:[#allocation7 + $0x50] sm:$0xf] %v686
    %751 = vst [vmem:[#allocation7 + $0x54] sm:$0xf] %v687
    %752 = vst [vmem:[#allocation7 + $0x58] sm:$0xf] %v688
    %753 = vst [vmem:[#allocation7 + $0x5c] sm:$0xf] %v689
    %754 = vst [vmem:[#allocation7 + $0x60] sm:$0xf] %v690
    %755 = vst [vmem:[#allocation7 + $0x64] sm:$0xf] %v691
    %756 = vst [vmem:[#allocation7 + $0x68] sm:$0xf] %v692
    %757 = vst [vmem:[#allocation7 + $0x6c] sm:$0xf] %v693
    %758 = vst [vmem:[#allocation7 + $0x70] sm:$0xf] %v694
    %759 = vst [vmem:[#allocation7 + $0x74] sm:$0xf] %v695
    %760 = vst [vmem:[#allocation7 + $0x78] sm:$0xf] %v696
    %761 = vst [vmem:[#allocation7 + $0x7c] sm:$0xf] %v697
    %v762 = vpack.c.bf16 %v195, %v189
    %v763 = vpack.c.bf16 %v207, %v201
    %v764 = vpack.c.bf16 %v219, %v213
    %v765 = vpack.c.bf16 %v231, %v225
    %v766 = vpack.c.bf16 %v243, %v237
    %v767 = vpack.c.bf16 %v255, %v249
    %v768 = vpack.c.bf16 %v267, %v261
    %v769 = vpack.c.bf16 %v279, %v273
    %v770 = vpack.c.bf16 %v291, %v285
    %v771 = vpack.c.bf16 %v303, %v297
    %v772 = vpack.c.bf16 %v315, %v309
    %v773 = vpack.c.bf16 %v327, %v321
    %v774 = vpack.c.bf16 %v339, %v333
    %v775 = vpack.c.bf16 %v351, %v345
    %v776 = vpack.c.bf16 %v363, %v357
    %v777 = vpack.c.bf16 %v375, %v369
    %v794 = vunpack.c.l.b16 %v762
    %v795 = vunpack.c.h.b16 %v762
    %v796 = vunpack.c.l.b16 %v763
    %v797 = vunpack.c.h.b16 %v763
    %v798 = vunpack.c.l.b16 %v764
    %v799 = vunpack.c.h.b16 %v764
    %v800 = vunpack.c.l.b16 %v765
    %v801 = vunpack.c.h.b16 %v765
    %v802 = vunpack.c.l.b16 %v766
    %v803 = vunpack.c.h.b16 %v766
    %v804 = vunpack.c.l.b16 %v767
    %v805 = vunpack.c.h.b16 %v767
    %v806 = vunpack.c.l.b16 %v768
    %v807 = vunpack.c.h.b16 %v768
    %v808 = vunpack.c.l.b16 %v769
    %v809 = vunpack.c.h.b16 %v769
    %v810 = vunpack.c.l.b16 %v770
    %v811 = vunpack.c.h.b16 %v770
    %v812 = vunpack.c.l.b16 %v771
    %v813 = vunpack.c.h.b16 %v771
    %v814 = vunpack.c.l.b16 %v772
    %v815 = vunpack.c.h.b16 %v772
    %v816 = vunpack.c.l.b16 %v773
    %v817 = vunpack.c.h.b16 %v773
    %v818 = vunpack.c.l.b16 %v774
    %v819 = vunpack.c.h.b16 %v774
    %v820 = vunpack.c.l.b16 %v775
    %v821 = vunpack.c.h.b16 %v775
    %v822 = vunpack.c.l.b16 %v776
    %v823 = vunpack.c.h.b16 %v776
    %v824 = vunpack.c.l.b16 %v777
    %v825 = vunpack.c.h.b16 %v777
    %v826 = vpack.c.b16 %v794, %v794
    %v827 = vpack.c.b16 %v795, %v795
    %v828 = vpack.c.b16 %v796, %v796
    %v829 = vpack.c.b16 %v797, %v797
    %v830 = vpack.c.b16 %v798, %v798
    %v831 = vpack.c.b16 %v799, %v799
    %v832 = vpack.c.b16 %v800, %v800
    %v833 = vpack.c.b16 %v801, %v801
    %v834 = vpack.c.b16 %v802, %v802
    %v835 = vpack.c.b16 %v803, %v803
    %v836 = vpack.c.b16 %v804, %v804
    %v837 = vpack.c.b16 %v805, %v805
    %v838 = vpack.c.b16 %v806, %v806
    %v839 = vpack.c.b16 %v807, %v807
    %v840 = vpack.c.b16 %v808, %v808
    %v841 = vpack.c.b16 %v809, %v809
    %v842 = vpack.c.b16 %v810, %v810
    %v843 = vpack.c.b16 %v811, %v811
    %v844 = vpack.c.b16 %v812, %v812
    %v845 = vpack.c.b16 %v813, %v813
    %v846 = vpack.c.b16 %v814, %v814
    %v847 = vpack.c.b16 %v815, %v815
    %v848 = vpack.c.b16 %v816, %v816
    %v849 = vpack.c.b16 %v817, %v817
    %v850 = vpack.c.b16 %v818, %v818
    %v851 = vpack.c.b16 %v819, %v819
    %v852 = vpack.c.b16 %v820, %v820
    %v853 = vpack.c.b16 %v821, %v821
    %v854 = vpack.c.b16 %v822, %v822
    %v855 = vpack.c.b16 %v823, %v823
    %v856 = vpack.c.b16 %v824, %v824
    %v857 = vpack.c.b16 %v825, %v825
    %s890 = scalar_lea.vmem [#allocation7], 128
    %891 = vst [vmem:[%s890] sm:$0xf] %v826
    %892 = vst [vmem:[%s890 + $0x4] sm:$0xf] %v827
    %893 = vst [vmem:[%s890 + $0x8] sm:$0xf] %v828
    %894 = vst [vmem:[%s890 + $0xc] sm:$0xf] %v829
    %895 = vst [vmem:[%s890 + $0x10] sm:$0xf] %v830
    %896 = vst [vmem:[%s890 + $0x14] sm:$0xf] %v831
    %897 = vst [vmem:[%s890 + $0x18] sm:$0xf] %v832
    %898 = vst [vmem:[%s890 + $0x1c] sm:$0xf] %v833
    %899 = vst [vmem:[%s890 + $0x20] sm:$0xf] %v834
    %900 = vst [vmem:[%s890 + $0x24] sm:$0xf] %v835
    %901 = vst [vmem:[%s890 + $0x28] sm:$0xf] %v836
    %902 = vst [vmem:[%s890 + $0x2c] sm:$0xf] %v837
    %903 = vst [vmem:[%s890 + $0x30] sm:$0xf] %v838
    %904 = vst [vmem:[%s890 + $0x34] sm:$0xf] %v839
    %905 = vst [vmem:[%s890 + $0x38] sm:$0xf] %v840
    %906 = vst [vmem:[%s890 + $0x3c] sm:$0xf] %v841
    %907 = vst [vmem:[%s890 + $0x40] sm:$0xf] %v842
    %908 = vst [vmem:[%s890 + $0x44] sm:$0xf] %v843
    %909 = vst [vmem:[%s890 + $0x48] sm:$0xf] %v844
    %910 = vst [vmem:[%s890 + $0x4c] sm:$0xf] %v845
    %911 = vst [vmem:[%s890 + $0x50] sm:$0xf] %v846
    %912 = vst [vmem:[%s890 + $0x54] sm:$0xf] %v847
    %913 = vst [vmem:[%s890 + $0x58] sm:$0xf] %v848
    %914 = vst [vmem:[%s890 + $0x5c] sm:$0xf] %v849
    %915 = vst [vmem:[%s890 + $0x60] sm:$0xf] %v850
    %916 = vst [vmem:[%s890 + $0x64] sm:$0xf] %v851
    %917 = vst [vmem:[%s890 + $0x68] sm:$0xf] %v852
    %918 = vst [vmem:[%s890 + $0x6c] sm:$0xf] %v853
    %919 = vst [vmem:[%s890 + $0x70] sm:$0xf] %v854
    %920 = vst [vmem:[%s890 + $0x74] sm:$0xf] %v855
    %921 = vst [vmem:[%s890 + $0x78] sm:$0xf] %v856
    %922 = vst [vmem:[%s890 + $0x7c] sm:$0xf] %v857
    %v923 = vpack.c.bf16 %v449, %v444
    %v924 = vpack.c.bf16 %v459, %v454
    %v925 = vpack.c.bf16 %v469, %v464
    %v926 = vpack.c.bf16 %v479, %v474
    %v927 = vpack.c.bf16 %v489, %v484
    %v928 = vpack.c.bf16 %v499, %v494
    %v929 = vpack.c.bf16 %v509, %v504
    %v930 = vpack.c.bf16 %v519, %v514
    %v931 = vpack.c.bf16 %v529, %v524
    %v932 = vpack.c.bf16 %v539, %v534
    %v933 = vpack.c.bf16 %v549, %v544
    %v934 = vpack.c.bf16 %v559, %v554
    %v935 = vpack.c.bf16 %v569, %v564
    %v936 = vpack.c.bf16 %v579, %v574
    %v937 = vpack.c.bf16 %v589, %v584
    %v938 = vpack.c.bf16 %v599, %v594
    %v955 = vunpack.c.l.b16 %v923
    %v956 = vunpack.c.h.b16 %v923
    %v957 = vunpack.c.l.b16 %v924
    %v958 = vunpack.c.h.b16 %v924
    %v959 = vunpack.c.l.b16 %v925
    %v960 = vunpack.c.h.b16 %v925
    %v961 = vunpack.c.l.b16 %v926
    %v962 = vunpack.c.h.b16 %v926
    %v963 = vunpack.c.l.b16 %v927
    %v964 = vunpack.c.h.b16 %v927
    %v965 = vunpack.c.l.b16 %v928
    %v966 = vunpack.c.h.b16 %v928
    %v967 = vunpack.c.l.b16 %v929
    %v968 = vunpack.c.h.b16 %v929
    %v969 = vunpack.c.l.b16 %v930
    %v970 = vunpack.c.h.b16 %v930
    %v971 = vunpack.c.l.b16 %v931
    %v972 = vunpack.c.h.b16 %v931
    %v973 = vunpack.c.l.b16 %v932
    %v974 = vunpack.c.h.b16 %v932
    %v975 = vunpack.c.l.b16 %v933
    %v976 = vunpack.c.h.b16 %v933
    %v977 = vunpack.c.l.b16 %v934
    %v978 = vunpack.c.h.b16 %v934
    %v979 = vunpack.c.l.b16 %v935
    %v980 = vunpack.c.h.b16 %v935
    %v981 = vunpack.c.l.b16 %v936
    %v982 = vunpack.c.h.b16 %v936
    %v983 = vunpack.c.l.b16 %v937
    %v984 = vunpack.c.h.b16 %v937
    %v985 = vunpack.c.l.b16 %v938
    %v986 = vunpack.c.h.b16 %v938
    %v987 = vpack.c.b16 %v955, %v955
    %v988 = vpack.c.b16 %v956, %v956
    %v989 = vpack.c.b16 %v957, %v957
    %v990 = vpack.c.b16 %v958, %v958
    %v991 = vpack.c.b16 %v959, %v959
    %v992 = vpack.c.b16 %v960, %v960
    %v993 = vpack.c.b16 %v961, %v961
    %v994 = vpack.c.b16 %v962, %v962
    %v995 = vpack.c.b16 %v963, %v963
    %v996 = vpack.c.b16 %v964, %v964
    %v997 = vpack.c.b16 %v965, %v965
    %v998 = vpack.c.b16 %v966, %v966
    %v999 = vpack.c.b16 %v967, %v967
    %v1000 = vpack.c.b16 %v968, %v968
    %v1001 = vpack.c.b16 %v969, %v969
    %v1002 = vpack.c.b16 %v970, %v970
    %v1003 = vpack.c.b16 %v971, %v971
    %v1004 = vpack.c.b16 %v972, %v972
    %v1005 = vpack.c.b16 %v973, %v973
    %v1006 = vpack.c.b16 %v974, %v974
    %v1007 = vpack.c.b16 %v975, %v975
    %v1008 = vpack.c.b16 %v976, %v976
    %v1009 = vpack.c.b16 %v977, %v977
    %v1010 = vpack.c.b16 %v978, %v978
    %v1011 = vpack.c.b16 %v979, %v979
    %v1012 = vpack.c.b16 %v980, %v980
    %v1013 = vpack.c.b16 %v981, %v981
    %v1014 = vpack.c.b16 %v982, %v982
    %v1015 = vpack.c.b16 %v983, %v983
    %v1016 = vpack.c.b16 %v984, %v984
    %v1017 = vpack.c.b16 %v985, %v985
    %v1018 = vpack.c.b16 %v986, %v986
    %s1051 = scalar_lea.vmem [#allocation7], 256
    %1052 = vst [vmem:[%s1051] sm:$0xf] %v987
    %1053 = vst [vmem:[%s1051 + $0x4] sm:$0xf] %v988
    %1054 = vst [vmem:[%s1051 + $0x8] sm:$0xf] %v989
    %1055 = vst [vmem:[%s1051 + $0xc] sm:$0xf] %v990
    %1056 = vst [vmem:[%s1051 + $0x10] sm:$0xf] %v991
    %1057 = vst [vmem:[%s1051 + $0x14] sm:$0xf] %v992
    %1058 = vst [vmem:[%s1051 + $0x18] sm:$0xf] %v993
    %1059 = vst [vmem:[%s1051 + $0x1c] sm:$0xf] %v994
    %1060 = vst [vmem:[%s1051 + $0x20] sm:$0xf] %v995
    %1061 = vst [vmem:[%s1051 + $0x24] sm:$0xf] %v996
    %1062 = vst [vmem:[%s1051 + $0x28] sm:$0xf] %v997
    %1063 = vst [vmem:[%s1051 + $0x2c] sm:$0xf] %v998
    %1064 = vst [vmem:[%s1051 + $0x30] sm:$0xf] %v999
    %1065 = vst [vmem:[%s1051 + $0x34] sm:$0xf] %v1000
    %1066 = vst [vmem:[%s1051 + $0x38] sm:$0xf] %v1001
    %1067 = vst [vmem:[%s1051 + $0x3c] sm:$0xf] %v1002
    %1068 = vst [vmem:[%s1051 + $0x40] sm:$0xf] %v1003
    %1069 = vst [vmem:[%s1051 + $0x44] sm:$0xf] %v1004
    %1070 = vst [vmem:[%s1051 + $0x48] sm:$0xf] %v1005
    %1071 = vst [vmem:[%s1051 + $0x4c] sm:$0xf] %v1006
    %1072 = vst [vmem:[%s1051 + $0x50] sm:$0xf] %v1007
    %1073 = vst [vmem:[%s1051 + $0x54] sm:$0xf] %v1008
    %1074 = vst [vmem:[%s1051 + $0x58] sm:$0xf] %v1009
    %1075 = vst [vmem:[%s1051 + $0x5c] sm:$0xf] %v1010
    %1076 = vst [vmem:[%s1051 + $0x60] sm:$0xf] %v1011
    %1077 = vst [vmem:[%s1051 + $0x64] sm:$0xf] %v1012
    %1078 = vst [vmem:[%s1051 + $0x68] sm:$0xf] %v1013
    %1079 = vst [vmem:[%s1051 + $0x6c] sm:$0xf] %v1014
    %1080 = vst [vmem:[%s1051 + $0x70] sm:$0xf] %v1015
    %1081 = vst [vmem:[%s1051 + $0x74] sm:$0xf] %v1016
    %1082 = vst [vmem:[%s1051 + $0x78] sm:$0xf] %v1017
    %1083 = vst [vmem:[%s1051 + $0x7c] sm:$0xf] %v1018
    // Predicated region
    $region18: #{tpu_custom_call.1} parent=1 // pred_check
      _
    $region19: #{tpu_custom_call.1} parent=1 // pred_check_branch
      %1085 = sbr.rel (0) target = $region21
    $region20: #{tpu_custom_call.1} parent=1 // pred_region
      %s1087 = ssub.s32 6144, 6144
      %1088 = vsyncadd [#allocation4], %s1087
      %s1089 = sshll.u32 [#allocation7], 4
      %s1090 = int_to_ptr.vmem [resolvable:$true] %s1089
      %1095 = dma.vmem_to_hbm [thread:$0]  %s1090, 6144, %s2, [#allocation4], 64, 64, 4
    $region21: #{tpu_custom_call.1} parent=1 // pred_fallthru
      _
    // Predicated region
    $region22: #{tpu_custom_call.1} parent=1 // pred_check
      _
    $region23: #{tpu_custom_call.1} parent=1 // pred_check_branch
      %1097 = sbr.rel (0) target = $region25
    $region24: #{tpu_custom_call.1} parent=1 // pred_region
      %1098 = dma.done [#allocation4], 6144
    $region25: #{tpu_custom_call.1} parent=1 // pred_fallthru
      _
    %1099 = vsyncpa [#allocation3], 1
    %1100 = vsyncpa [#allocation6], 1
    %1101 = vsyncpa [#allocation4], 1

</llo_original>
